<compile_context>
chip_gen: v5e
topology: v5e:2x2
jax: 0.10.0
libtpu: 0.0.40
codegen_flags: <defaults>
</compile_context>

<pallas_src>
import functools
import math

import jax
import jax.numpy as jnp
from jax.experimental import pallas as pl
from jax.experimental.pallas import tpu as pltpu

EMBED_DIM = 512
_NEG_BIG = -1e30  # finite stand-in for -inf (keeps exp()/max() NaN-free; f32 only)


def _round_up(x, k):
    return ((x + k - 1) // k) * k


def _pick_bt(B, max_bt=256):
    """Largest multiple-of-8 divisor of B <= max_bt; prefer >=2 tiles (v7x)."""
    assert B % 8 == 0, "batch must be a multiple of 8"
    best, d = 8, 8
    while d <= min(B, max_bt):
        if B % d == 0:
            best = d
        d += 8
    if best == B and B >= 16 and (B // 2) % 8 == 0:
        best = B // 2          # ensure both v7x TensorCores get a batch tile
    return best


# ----------------------------------------------------------------------------
# Backbone kernel: patch-embed matmul (bf16 MXU, f32 acc) + fused L2 normalize.
# Emits bf16 normalized embeddings + f32 norms.
# ----------------------------------------------------------------------------
def _backbone_kernel(x_ref, w_ref, b_ref, embn_ref, norms_ref):
    emb = (jnp.dot(x_ref[...], w_ref[...], preferred_element_type=jnp.float32)
           + b_ref[...])                                            # (Bt, D) f32
    ss = jnp.sum(emb * emb, axis=1, keepdims=True)                  # (Bt, 1)
    norms_ref[...] = jnp.sqrt(ss)                                   # torch.linalg.vector_norm
    inv = jax.lax.rsqrt(jnp.maximum(ss, 1e-24))                     # == 1/max(||e||, 1e-12)
    embn_ref[...] = (emb * inv).astype(embn_ref.dtype)              # F.normalize, bf16


def backbone_forward(imgs_nchw, w_patch, b_patch, *, patch=4):
    B, cin, H, W = imgs_nchw.shape
    hp, wp = H // patch, W // patch
    pdim = cin * patch * patch

    # glue: NCHW -> (B, Np, Pdim) patches -> mean over patches (pool BEFORE the
    # linear patch-embed matmul; exact, removes Np x MXU work).
    x = jnp.transpose(imgs_nchw, (0, 2, 3, 1))                      # NHWC
    x = x.reshape(B, hp, patch, wp, patch, cin)
    x = jnp.transpose(x, (0, 1, 3, 2, 4, 5)).reshape(B, hp * wp, pdim)
    pooled = jnp.mean(x.astype(jnp.float32), axis=1)                # (B, Pdim)

    kpad = _round_up(pdim, 128)
    pooled = jnp.pad(pooled, ((0, 0), (0, kpad - pdim))).astype(jnp.bfloat16)
    w = jnp.pad(w_patch, ((0, kpad - pdim), (0, 0))).astype(jnp.bfloat16)

    bt = _pick_bt(B)

    emb_n, norms = pl.pallas_call(
        _backbone_kernel,
        out_shape=(jax.ShapeDtypeStruct((B, EMBED_DIM), jnp.bfloat16),
                   jax.ShapeDtypeStruct((B, 1), jnp.float32)),
        grid=(B // bt,),
        in_specs=[
            pl.BlockSpec((bt, kpad), lambda i: (i, 0)),
            pl.BlockSpec((kpad, EMBED_DIM), lambda i: (0, 0)),
            pl.BlockSpec((1, EMBED_DIM), lambda i: (0, 0)),
        ],
        out_specs=(pl.BlockSpec((bt, EMBED_DIM), lambda i: (i, 0)),
                   pl.BlockSpec((bt, 1), lambda i: (i, 0))),
        compiler_params=pltpu.CompilerParams(
            dimension_semantics=("parallel",)),
    )(pooled, w, b_patch.astype(jnp.float32))
    return emb_n, norms


# ----------------------------------------------------------------------------
# One-pass class-weight normalization: f32 rsqrt-normalize, cast to bf16.
# ----------------------------------------------------------------------------
def _wnorm_kernel(w_ref, wn_ref):
    w = w_ref[...]                                                  # (Ct, D) f32
    ss = jnp.sum(w * w, axis=1, keepdims=True)
    inv = jax.lax.rsqrt(jnp.maximum(ss, 1e-24))                     # padded rows -> 0
    wn_ref[...] = (w * inv).astype(wn_ref.dtype)


def _l2_normalize_rows_bf16(class_weight, c_pad, ct):
    C, D = class_weight.shape
    w = jnp.pad(class_weight.astype(jnp.float32), ((0, c_pad - C), (0, 0)))
    return pl.pallas_call(
        _wnorm_kernel,
        out_shape=jax.ShapeDtypeStruct((c_pad, D), jnp.bfloat16),
        grid=(c_pad // ct,),
        in_specs=[pl.BlockSpec((ct, D), lambda i: (i, 0))],
        out_specs=pl.BlockSpec((ct, D), lambda i: (i, 0)),
        compiler_params=pltpu.CompilerParams(
            dimension_semantics=("parallel",)),
    )(w)


# ----------------------------------------------------------------------------
# Head kernel: tiled cosine logits (bf16 operands, f32 acc), ArcFace/CosFace
# margin on the positive only, online log-sum-exp over class tiles.
# Grid = (batch tiles ["parallel"], class tiles ["arbitrary"]).
# ----------------------------------------------------------------------------
def _face_head_kernel(embn_ref, wn_ref, lab_ref, ce_ref,
                      m_sc, l_sc, pos_sc,
                      *, m, s, loss_type, num_classes, class_tile):
    c = pl.program_id(1)
    n_c = pl.num_programs(1)

    @pl.when(c == 0)
    def _init():
        m_sc[...] = jnp.full(m_sc.shape, _NEG_BIG, m_sc.dtype)
        l_sc[...] = jnp.zeros(l_sc.shape, l_sc.dtype)
        pos_sc[...] = jnp.zeros(pos_sc.shape, pos_sc.dtype)

    # cosine logits for this class tile: both operands pre-normalized bf16,
    # f32 accumulation on the MXU.
    logits = jax.lax.dot_general(
        embn_ref[...], wn_ref[...],
        dimension_numbers=(((1,), (1,)), ((), ())),
        preferred_element_type=jnp.float32)                         # (Bt, Ct)

    bt, ct = logits.shape
    lab = lab_ref[...]                                              # (Bt, 1) i32
    base = c * class_tile
    col = base + jax.lax.broadcasted_iota(jnp.int32, (bt, ct), 1)
    onehot = col == lab
    # positive-in-this-tile flag from a cheap range check (no cross-lane max)
    hit = jnp.logical_and(lab >= base, lab < base + class_tile).astype(jnp.float32)
    pos_raw = jnp.sum(jnp.where(onehot, logits, 0.0), axis=1, keepdims=True)

    # margin math on the (Bt, 1) positive only -- O(B), not O(B*C)
    if loss_type == "arcface":
        # cos(clip(acos(xc) + m, 0, pi)) without acos:
        #   theta > pi  <=>  xc < -cos(m)  ->  cos(pi) = -1
        #   else cos(acos(xc)+m) = xc*cos(m) - sqrt(1-xc^2)*sin(m)
        xc = jnp.clip(pos_raw, -0.999, 0.999)
        cos_m, sin_m = math.cos(m), math.sin(m)
        margined = jnp.where(
            xc < -cos_m, -1.0,
            xc * cos_m - jnp.sqrt(jnp.maximum(1.0 - xc * xc, 0.0)) * sin_m)
    elif loss_type == "cosface":
        margined = pos_raw - m
    else:
        raise NotImplementedError(loss_type)  # TODO(synk): adaface (stateful buffers)

    # single fused select; class-padding mask emitted only when padding exists
    if num_classes % class_tile:
        logits = jnp.where(onehot, margined,
                           jnp.where(col < num_classes, logits, _NEG_BIG))
    else:
        logits = jnp.where(onehot, margined, logits)
    scaled = logits * s

    # online log-sum-exp over the class axis
    m_new = jnp.maximum(m_sc[...], jnp.max(scaled, axis=1, keepdims=True))
    alpha = jnp.exp(m_sc[...] - m_new)
    l_sc[...] = alpha * l_sc[...] + jnp.sum(jnp.exp(scaled - m_new), axis=1,
                                            keepdims=True)
    m_sc[...] = m_new
    pos_sc[...] = pos_sc[...] + hit * (margined * s)

    @pl.when(c == n_c - 1)
    def _finalize():
        # per-sample cross-entropy; mean reduction taken in the wrapper
        ce_ref[...] = m_sc[...] + jnp.log(l_sc[...]) - pos_sc[...]


def face_head(emb_n, class_weight, labels, *, m, s, loss_type,
              class_tile=2048, max_batch_tile=256, w_buffers=3):
    B, D = emb_n.shape
    C = class_weight.shape[0]

    bt = _pick_bt(B, max_batch_tile)
    ct = min(class_tile, _round_up(C, 8))
    assert ct % 8 == 0
    c_pad = _round_up(C, ct)
    n_ct = c_pad // ct

    # Pre-normalize + bf16-cast the class weights ONCE (separate tiny kernel):
    # halves the dominant W HBM traffic of the head and removes the per-step
    # f32 divide (EUP) that used to run per batch tile per class tile.
    w_n = _l2_normalize_rows_bf16(class_weight, c_pad, ct)

    kernel = functools.partial(
        _face_head_kernel, m=m, s=s, loss_type=loss_type,
        num_classes=C, class_tile=ct)

    # Deeper W buffering hides per-tile DMA latency (mainly v5e/v6e); only
    # engaged when there are enough class tiles, with a fallback for jax
    # versions lacking BlockSpec.pipeline_mode.
    wb = min(w_buffers, n_ct)
    w_spec = pl.BlockSpec((ct, D), lambda b, c: (c, 0))
    if wb > 2 and hasattr(pl, "Buffered"):
        try:
            w_spec = pl.BlockSpec((ct, D), lambda b, c: (c, 0),
                                  pipeline_mode=pl.Buffered(wb))
        except TypeError:
            pass

    ce = pl.pallas_call(
        kernel,
        out_shape=jax.ShapeDtypeStruct((B, 1), jnp.float32),   # per-sample CE
        grid=(B // bt, n_ct),
        in_specs=[
            pl.BlockSpec((bt, D), lambda b, c: (b, 0)),   # bf16 normalized embs
            w_spec,                                       # bf16 normalized W tiles
            pl.BlockSpec((bt, 1), lambda b, c: (b, 0)),   # labels
        ],
        out_specs=pl.BlockSpec((bt, 1), lambda b, c: (b, 0)),
        scratch_shapes=[
            pltpu.VMEM((bt, 1), jnp.float32),   # running max
            pltpu.VMEM((bt, 1), jnp.float32),   # running sum
            pltpu.VMEM((bt, 1), jnp.float32),   # scaled positive logit
        ],
        compiler_params=pltpu.CompilerParams(
            dimension_semantics=("parallel", "arbitrary"),
            # bf16 W tiles (<= ~4 MiB triple-buffered) + (bt,ct) f32 logits temp
            # stay well under this even at bt=512/ct=2048; 40 MiB leaves
            # headroom on v7x's 64 MiB VMEM and is plenty on v5e/v6e.
            vmem_limit_bytes=40 * 1024 * 1024),
    )(emb_n, w_n, labels.astype(jnp.int32).reshape(B, 1))

    loss = jnp.sum(ce[:, 0]) / B          # F.cross_entropy mean reduction
    return loss


def timmface_forward(imgs, labels, params, *, m=0.5, s=64.0,
                     loss_type="arcface", class_tile=2048, patch=4):
    """Training-mode TimmFace forward: returns (loss, norms)."""
    emb_n, norms = backbone_forward(imgs, params["w_patch"], params["b_patch"],
                                    patch=patch)
    loss = face_head(emb_n, params["weight"], labels,
                     m=m, s=s, loss_type=loss_type, class_tile=class_tile)
    return loss, norms[:, 0]


# ----------------------------------------------------------------------------
# Pure-JAX reference for a correctness check (f32, HIGHEST precision).
# ----------------------------------------------------------------------------
def reference(imgs, labels, params, *, m=0.5, s=64.0, patch=4,
              loss_type="arcface"):
    B, cin, H, W = imgs.shape
    hp, wp = H // patch, W // patch
    x = jnp.transpose(imgs, (0, 2, 3, 1)).reshape(B, hp, patch, wp, patch, cin)
    x = jnp.transpose(x, (0, 1, 3, 2, 4, 5)).reshape(B, hp * wp, cin * patch * patch)
    tok = jnp.einsum("bnp,pd->bnd", x, params["w_patch"],
                     precision=jax.lax.Precision.HIGHEST)
    embs = tok.mean(axis=1) + params["b_patch"][0]
    norms = jnp.linalg.norm(embs, axis=1)
    emb_n = embs / jnp.maximum(norms[:, None], 1e-12)
    w = params["weight"]
    w_n = w / jnp.maximum(jnp.linalg.norm(w, axis=1, keepdims=True), 1e-12)
    logits = emb_n @ w_n.T
    pos = logits[jnp.arange(B), labels]
    if loss_type == "arcface":
        theta = jnp.arccos(jnp.clip(pos, -0.999, 0.999)) + m
        new_pos = jnp.cos(jnp.clip(theta, 0.0, jnp.pi))
    elif loss_type == "cosface":
        new_pos = pos - m
    else:
        raise NotImplementedError(loss_type)
    logits = logits.at[jnp.arange(B), labels].set(new_pos)
    scaled = logits * s
    lse = jax.scipy.special.logsumexp(scaled, axis=1)
    loss = jnp.mean(lse - scaled[jnp.arange(B), labels])
    return loss, norms


if __name__ == "__main__":
    B, CIN, H, W = 8, 3, 16, 16
    N_CLASSES = 120        # not a multiple of class_tile -> exercises padding mask
    PATCH = 4

    key = jax.random.PRNGKey(0)
    k1, k2, k3, k4 = jax.random.split(key, 4)
    imgs = jax.random.normal(k1, (B, CIN, H, W), jnp.float32)
    labels = jax.random.randint(k2, (B,), 0, N_CLASSES)
    params = dict(
        # synthetic backbone stem weights
        w_patch=(0.02 * jax.random.normal(k3, (CIN * PATCH * PATCH, EMBED_DIM),
                                          jnp.float32)),
        b_patch=jnp.zeros((1, EMBED_DIM), jnp.float32),
        # nn.Parameter(torch.empty(n_classes, 512).normal_(0, 0.01))
        weight=(0.01 * jax.random.normal(k4, (N_CLASSES, EMBED_DIM), jnp.float32)),
    )

    # class_tile=64 -> 2 class tiles: exercises the online-LSE accumulation and
    # the class-padding mask (120 classes padded to 128).
    for loss_type, margin in (("arcface", 0.5), ("cosface", 0.4)):
        loss, norms = timmface_forward(imgs, labels, params, m=margin, s=64.0,
                                       loss_type=loss_type, class_tile=64)
        jax.block_until_ready((loss, norms))
        ref_loss, ref_norms = reference(imgs, labels, params, m=margin, s=64.0,
                                        patch=PATCH, loss_type=loss_type)
        # bf16 MXU operands (f32 accumulation) -> slightly looser loss tolerance.
        assert jnp.allclose(loss, ref_loss, rtol=2e-2, atol=2e-2), (
            loss_type, loss, ref_loss)
        assert jnp.allclose(norms, ref_norms, rtol=1e-2, atol=1e-3), (
            loss_type, norms, ref_norms)

    print("KERNEL_OK")
</pallas_src>

<mosaic_0001>
module attributes {stable_mosaic.version = 11 : i64} {
  func.func @_backbone_kernel(%arg0: i32, %arg1: memref<8x128xbf16, #tpu.memory_space<vmem>>, %arg2: memref<128x512xbf16, #tpu.memory_space<vmem>>, %arg3: memref<1x512xf32, #tpu.memory_space<vmem>>, %arg4: memref<8x512xbf16, #tpu.memory_space<vmem>>, %arg5: memref<8x1xf32, #tpu.memory_space<vmem>>) attributes {dimension_semantics = [#tpu.dimension_semantics<parallel>], iteration_bounds = array<i64: 1>, scalar_prefetch = 0 : i64, scratch_operands = 0 : i64, tpu.core_type = #tpu.core_type<tc>, window_params = [{transform_indices = @transform_0, window_bounds = array<i64: 8, 128>}, {pipeline_mode = #tpu.pipeline_mode<synchronous>, transform_indices = @transform_1, window_bounds = array<i64: 128, 512>}, {pipeline_mode = #tpu.pipeline_mode<synchronous>, transform_indices = @transform_2, window_bounds = array<i64: 1, 512>}, {transform_indices = @transform_3, window_bounds = array<i64: 8, 512>}, {transform_indices = @transform_4, window_bounds = array<i64: 8, 1>}]} {
    %c0 = arith.constant 0 : index
    %c0_0 = arith.constant 0 : index
    %0 = vector.load %arg1[%c0, %c0_0] : memref<8x128xbf16, #tpu.memory_space<vmem>>, vector<8x128xbf16>
    %c0_1 = arith.constant 0 : index
    %c0_2 = arith.constant 0 : index
    %1 = vector.load %arg2[%c0_1, %c0_2] : memref<128x512xbf16, #tpu.memory_space<vmem>>, vector<128x512xbf16>
    %cst = arith.constant dense<0.000000e+00> : vector<8x512xf32>
    %2 = tpu.matmul %0, %1, %cst {dimension_numbers = #tpu.dot_dimension_numbers<[1], [0], [0], [1], [0, 0, 1, 1], [], []>} : vector<8x128xbf16>, vector<128x512xbf16>, vector<8x512xf32> -> vector<8x512xf32>
    %c0_3 = arith.constant 0 : index
    %c0_4 = arith.constant 0 : index
    %3 = vector.load %arg3[%c0_3, %c0_4] : memref<1x512xf32, #tpu.memory_space<vmem>>, vector<1x512xf32>
    %4 = vector.broadcast %3 : vector<1x512xf32> to vector<8x512xf32>
    %5 = arith.addf %2, %4 : vector<8x512xf32>
    %6 = arith.mulf %5, %5 : vector<8x512xf32>
    %cst_5 = arith.constant dense<0.000000e+00> : vector<8xf32>
    %7 = vector.multi_reduction <add>, %6, %cst_5 [1] : vector<8x512xf32> to vector<8xf32>
    %8 = vector.shape_cast %7 : vector<8xf32> to vector<8x1xf32>
    %9 = math.sqrt %8 : vector<8x1xf32>
    %c0_6 = arith.constant 0 : index
    %c0_7 = arith.constant 0 : index
    %10 = vector.load %arg5[%c0_6, %c0_7] : memref<8x1xf32, #tpu.memory_space<vmem>>, vector<8x1xf32>
    tpu.vector_store %arg5[%c0_6, %c0_7], %9 {strides = array<i32>} : memref<8x1xf32, #tpu.memory_space<vmem>>, vector<8x1xf32>,
    %cst_8 = arith.constant 1.000000e-24 : f32
    %11 = vector.broadcast %cst_8 : f32 to vector<8x1xf32>
    %12 = arith.maximumf %8, %11 : vector<8x1xf32>
    %13 = math.rsqrt %12 : vector<8x1xf32>
    %14 = vector.broadcast %13 : vector<8x1xf32> to vector<8x512xf32>
    %15 = arith.mulf %5, %14 : vector<8x512xf32>
    %16 = arith.truncf %15 : vector<8x512xf32> to vector<8x512xbf16>
    %c0_9 = arith.constant 0 : index
    %c0_10 = arith.constant 0 : index
    %17 = vector.load %arg4[%c0_9, %c0_10] : memref<8x512xbf16, #tpu.memory_space<vmem>>, vector<8x512xbf16>
    tpu.vector_store %arg4[%c0_9, %c0_10], %16 {strides = array<i32>} : memref<8x512xbf16, #tpu.memory_space<vmem>>, vector<8x512xbf16>,
    return
  }
  func.func @transform_0(%arg0: i32) -> (i32, i32) {
    %c0_i32 = arith.constant 0 : i32
    %c0_i32_0 = arith.constant 0 : i32
    return %arg0, %c0_i32 : i32, i32
  }
  func.func @transform_1(%arg0: i32) -> (i32, i32) {
    %c0_i32 = arith.constant 0 : i32
    %c0_i32_0 = arith.constant 0 : i32
    %c0_i32_1 = arith.constant 0 : i32
    return %c0_i32, %c0_i32_0 : i32, i32
  }
  func.func @transform_2(%arg0: i32) -> (i32, i32) {
    %c0_i32 = arith.constant 0 : i32
    %c0_i32_0 = arith.constant 0 : i32
    %c0_i32_1 = arith.constant 0 : i32
    return %c0_i32, %c0_i32_0 : i32, i32
  }
  func.func @transform_3(%arg0: i32) -> (i32, i32) {
    %c0_i32 = arith.constant 0 : i32
    %c0_i32_0 = arith.constant 0 : i32
    return %arg0, %c0_i32 : i32, i32
  }
  func.func @transform_4(%arg0: i32) -> (i32, i32) {
    %c0_i32 = arith.constant 0 : i32
    %c0_i32_0 = arith.constant 0 : i32
    return %arg0, %c0_i32 : i32, i32
  }
}

</mosaic_0001>

<llo_original>
// kernel: tpu_custom_call.1
$region0: #{tpu_custom_call.1}
  #allocation0 [shape = 'u32[]', space=smem, size = 0x4, offset = 0x4, fixed_abs, tag = 'smem constant byte address 0x4 - core index']
  #allocation1 [shape = 'u32[72,128]{1,0:T(1,128)}', space=vmem, size = 0x9000, scoped, tag = 'internal scratch']
  %s0 = inlined_call_operand.hbm [shape: bf16[8,128], index: 0, kind: input, shape index: {}]
  %s1 = inlined_call_operand.hbm [shape: bf16[128,512], index: 1, kind: input, shape index: {}]
  %s2 = inlined_call_operand.hbm [shape: f32[1,512], index: 2, kind: input, shape index: {}]
  %s3 = inlined_call_operand.hbm [shape: bf16[8,512], index: 3, kind: output, shape index: {0}]
  %s4 = inlined_call_operand.vmem [shape: f32[8,1], index: 4, kind: output, shape index: {1}]
  %5 = xla_tuple %s3, %s4
  %s6 = sld [smem:[#allocation0]]
  $region42: #{tpu_custom_call.1} parent=0
    _
  %s8 = ssub.s32 1, %s6
  %s9 = scalar_select 0, %s8, %s6
  $region1: #{tpu_custom_call.1} parent=0
    #allocation2 [shape = 'u8[2048]{0}', space=vmem, size = 0x800, scoped, tag = 'input window, operand 0, single buffered']
    #allocation3 [shape = 's32[1]{0}', space=sflag, size = 0x4, scoped, tag = 'scoped memory for tpu_custom_call.1']
    #allocation4 [shape = 's32[1]{0}', space=sflag, size = 0x4, scoped, tag = 'scoped memory for tpu_custom_call.1']
    #allocation5 [shape = 'u8[131072]{0}', space=vmem, size = 0x20000, scoped, tag = 'input window, operand 1, single buffered']
    #allocation6 [shape = 's32[1]{0}', space=sflag, size = 0x4, scoped, tag = 'scoped memory for tpu_custom_call.1']
    #allocation7 [shape = 'u8[2048]{0}', space=vmem, size = 0x800, scoped, tag = 'input window, operand 2, single buffered']
    #allocation8 [shape = 'u8[8192]{0}', space=vmem, size = 0x2000, scoped, tag = 'output window, operand 0, single buffered']
    %10 = vsyncpa [#allocation3], 0
    %11 = vsyncpa [#allocation6], 0
    %12 = vsyncpa [#allocation4], 0
    // Predicated region
    $region2: #{tpu_custom_call.1} parent=1 // pred_check
      _
    $region3: #{tpu_custom_call.1} parent=1 // pred_check_branch
      %14 = sbr.rel (0) target = $region5
    $region4: #{tpu_custom_call.1} parent=1 // pred_region
      %16 = vsyncadd [#allocation3], 0
      %s18 = sshll.u32 %s0, 4
      %s19 = int_to_ptr.hbm [resolvable:$true] %s18
      %s20 = sshll.u32 [#allocation2], 4
      %s21 = int_to_ptr.vmem [resolvable:$true] %s20
      %23 = dma.hbm_to_vmem [thread:$0]  %s19, 64, %s21, [#allocation3]
    $region5: #{tpu_custom_call.1} parent=1 // pred_fallthru
      _
    // Predicated region
    $region6: #{tpu_custom_call.1} parent=1 // pred_check
      _
    $region7: #{tpu_custom_call.1} parent=1 // pred_check_branch
      %25 = sbr.rel (0) target = $region9
    $region8: #{tpu_custom_call.1} parent=1 // pred_region
      %27 = vsyncadd [#allocation6], 0
      %s28 = sshll.u32 %s1, 4
      %s29 = int_to_ptr.hbm [resolvable:$true] %s28
      %s30 = sshll.u32 [#allocation5], 4
      %s31 = int_to_ptr.vmem [resolvable:$true] %s30
      %36 = dma.hbm_to_vmem [thread:$0]  %s29, 4096, %s31, [#allocation6], 256, 256, 16
    $region9: #{tpu_custom_call.1} parent=1 // pred_fallthru
      _
    // Predicated region
    $region10: #{tpu_custom_call.1} parent=1 // pred_check
      _
    $region11: #{tpu_custom_call.1} parent=1 // pred_check_branch
      %38 = sbr.rel (0) target = $region13
    $region12: #{tpu_custom_call.1} parent=1 // pred_region
      %40 = vsyncadd [#allocation6], 0
      %s42 = sshll.u32 %s2, 4
      %s43 = int_to_ptr.hbm [resolvable:$true] %s42
      %s44 = sshll.u32 [#allocation7], 4
      %s45 = int_to_ptr.vmem [resolvable:$true] %s44
      %47 = dma.hbm_to_vmem [thread:$0]  %s43, 64, %s45, [#allocation6]
    $region13: #{tpu_custom_call.1} parent=1 // pred_fallthru
      _
    // Predicated region
    $region14: #{tpu_custom_call.1} parent=1 // pred_check
      _
    $region15: #{tpu_custom_call.1} parent=1 // pred_check_branch
      %49 = sbr.rel (0) target = $region17
    $region16: #{tpu_custom_call.1} parent=1 // pred_region
      %51 = dma.done [#allocation3], 64
    $region17: #{tpu_custom_call.1} parent=1 // pred_fallthru
      _
    // Predicated region
    $region18: #{tpu_custom_call.1} parent=1 // pred_check
      _
    $region19: #{tpu_custom_call.1} parent=1 // pred_check_branch
      %53 = sbr.rel (0) target = $region21
    $region20: #{tpu_custom_call.1} parent=1 // pred_region
      %55 = dma.done [#allocation6], 4096
    $region21: #{tpu_custom_call.1} parent=1 // pred_fallthru
      _
    // Predicated region
    $region22: #{tpu_custom_call.1} parent=1 // pred_check
      _
    $region23: #{tpu_custom_call.1} parent=1 // pred_check_branch
      %57 = sbr.rel (0) target = $region25
    $region24: #{tpu_custom_call.1} parent=1 // pred_region
      %59 = dma.done [#allocation6], 64
    $region25: #{tpu_custom_call.1} parent=1 // pred_fallthru
      _
    %v60 = vld [vmem:[#allocation2] sm:$0xf]
    %v61 = vld [vmem:[#allocation5] sm:$0xff]
    %v62 = vld [vmem:[#allocation5 + $0x8] sm:$0xff]
    %v63 = vld [vmem:[#allocation5 + $0x10] sm:$0xff]
    %v64 = vld [vmem:[#allocation5 + $0x18] sm:$0xff]
    %v65 = vld [vmem:[#allocation5 + $0x20] sm:$0xff]
    %v66 = vld [vmem:[#allocation5 + $0x28] sm:$0xff]
    %v67 = vld [vmem:[#allocation5 + $0x30] sm:$0xff]
    %v68 = vld [vmem:[#allocation5 + $0x38] sm:$0xff]
    %v69 = vld [vmem:[#allocation5 + $0x40] sm:$0xff]
    %v70 = vld [vmem:[#allocation5 + $0x48] sm:$0xff]
    %v71 = vld [vmem:[#allocation5 + $0x50] sm:$0xff]
    %v72 = vld [vmem:[#allocation5 + $0x58] sm:$0xff]
    %v73 = vld [vmem:[#allocation5 + $0x60] sm:$0xff]
    %v74 = vld [vmem:[#allocation5 + $0x68] sm:$0xff]
    %v75 = vld [vmem:[#allocation5 + $0x70] sm:$0xff]
    %v76 = vld [vmem:[#allocation5 + $0x78] sm:$0xff]
    %v77 = vld [vmem:[#allocation5 + $0x80] sm:$0xff]
    %v78 = vld [vmem:[#allocation5 + $0x88] sm:$0xff]
    %v79 = vld [vmem:[#allocation5 + $0x90] sm:$0xff]
    %v80 = vld [vmem:[#allocation5 + $0x98] sm:$0xff]
    %v81 = vld [vmem:[#allocation5 + $0xa0] sm:$0xff]
    %v82 = vld [vmem:[#allocation5 + $0xa8] sm:$0xff]
    %v83 = vld [vmem:[#allocation5 + $0xb0] sm:$0xff]
    %v84 = vld [vmem:[#allocation5 + $0xb8] sm:$0xff]
    %v85 = vld [vmem:[#allocation5 + $0xc0] sm:$0xff]
    %v86 = vld [vmem:[#allocation5 + $0xc8] sm:$0xff]
    %v87 = vld [vmem:[#allocation5 + $0xd0] sm:$0xff]
    %v88 = vld [vmem:[#allocation5 + $0xd8] sm:$0xff]
    %v89 = vld [vmem:[#allocation5 + $0xe0] sm:$0xff]
    %v90 = vld [vmem:[#allocation5 + $0xe8] sm:$0xff]
    %v91 = vld [vmem:[#allocation5 + $0xf0] sm:$0xff]
    %v92 = vld [vmem:[#allocation5 + $0xf8] sm:$0xff]
    %v93 = vld [vmem:[#allocation7] sm:$0xf]
    %v95 = vperm.slane %v93, 0
    %v96 = vperm.slane %v93, 1
    %v97 = vperm.slane %v93, 2
    %v98 = vperm.slane %v93, 3
    %v135 = vunpack.c.l.b16 %v61
    %v136 = vunpack.c.h.b16 %v61
    %v137 = vunpack.c.l.b16 %v62
    %v138 = vunpack.c.h.b16 %v62
    %v139 = vunpack.c.l.b16 %v63
    %v140 = vunpack.c.h.b16 %v63
    %v141 = vunpack.c.l.b16 %v64
    %v142 = vunpack.c.h.b16 %v64
    %v143 = vunpack.c.l.b16 %v65
    %v144 = vunpack.c.h.b16 %v65
    %v145 = vunpack.c.l.b16 %v66
    %v146 = vunpack.c.h.b16 %v66
    %v147 = vunpack.c.l.b16 %v67
    %v148 = vunpack.c.h.b16 %v67
    %v149 = vunpack.c.l.b16 %v68
    %v150 = vunpack.c.h.b16 %v68
    %v151 = vunpack.c.l.b16 %v69
    %v152 = vunpack.c.h.b16 %v69
    %v153 = vunpack.c.l.b16 %v70
    %v154 = vunpack.c.h.b16 %v70
    %v155 = vunpack.c.l.b16 %v71
    %v156 = vunpack.c.h.b16 %v71
    %v157 = vunpack.c.l.b16 %v72
    %v158 = vunpack.c.h.b16 %v72
    %v159 = vunpack.c.l.b16 %v73
    %v160 = vunpack.c.h.b16 %v73
    %v161 = vunpack.c.l.b16 %v74
    %v162 = vunpack.c.h.b16 %v74
    %v163 = vunpack.c.l.b16 %v75
    %v164 = vunpack.c.h.b16 %v75
    %v165 = vunpack.c.l.b16 %v76
    %v166 = vunpack.c.h.b16 %v76
    %v167 = vunpack.c.l.b16 %v77
    %v168 = vunpack.c.h.b16 %v77
    %v169 = vunpack.c.l.b16 %v78
    %v170 = vunpack.c.h.b16 %v78
    %v171 = vunpack.c.l.b16 %v79
    %v172 = vunpack.c.h.b16 %v79
    %v173 = vunpack.c.l.b16 %v80
    %v174 = vunpack.c.h.b16 %v80
    %v175 = vunpack.c.l.b16 %v81
    %v176 = vunpack.c.h.b16 %v81
    %v177 = vunpack.c.l.b16 %v82
    %v178 = vunpack.c.h.b16 %v82
    %v179 = vunpack.c.l.b16 %v83
    %v180 = vunpack.c.h.b16 %v83
    %v181 = vunpack.c.l.b16 %v84
    %v182 = vunpack.c.h.b16 %v84
    %v183 = vunpack.c.l.b16 %v85
    %v184 = vunpack.c.h.b16 %v85
    %v185 = vunpack.c.l.b16 %v86
    %v186 = vunpack.c.h.b16 %v86
    %v187 = vunpack.c.l.b16 %v87
    %v188 = vunpack.c.h.b16 %v87
    %v189 = vunpack.c.l.b16 %v88
    %v190 = vunpack.c.h.b16 %v88
    %v191 = vunpack.c.l.b16 %v89
    %v192 = vunpack.c.h.b16 %v89
    %v193 = vunpack.c.l.b16 %v90
    %v194 = vunpack.c.h.b16 %v90
    %v195 = vunpack.c.l.b16 %v91
    %v196 = vunpack.c.h.b16 %v91
    %v197 = vunpack.c.l.b16 %v92
    %v198 = vunpack.c.h.b16 %v92
    %v199 = vpack.c.b16 %v139, %v135
    %v200 = vpack.c.b16 %v140, %v136
    %v201 = vpack.c.b16 %v141, %v137
    %v202 = vpack.c.b16 %v142, %v138
    %v203 = vpack.c.b16 %v147, %v143
    %v204 = vpack.c.b16 %v148, %v144
    %v205 = vpack.c.b16 %v149, %v145
    %v206 = vpack.c.b16 %v150, %v146
    %v207 = vpack.c.b16 %v155, %v151
    %v208 = vpack.c.b16 %v156, %v152
    %v209 = vpack.c.b16 %v157, %v153
    %v210 = vpack.c.b16 %v158, %v154
    %v211 = vpack.c.b16 %v163, %v159
    %v212 = vpack.c.b16 %v164, %v160
    %v213 = vpack.c.b16 %v165, %v161
    %v214 = vpack.c.b16 %v166, %v162
    %v215 = vpack.c.b16 %v171, %v167
    %v216 = vpack.c.b16 %v172, %v168
    %v217 = vpack.c.b16 %v173, %v169
    %v218 = vpack.c.b16 %v174, %v170
    %v219 = vpack.c.b16 %v179, %v175
    %v220 = vpack.c.b16 %v180, %v176
    %v221 = vpack.c.b16 %v181, %v177
    %v222 = vpack.c.b16 %v182, %v178
    %v223 = vpack.c.b16 %v187, %v183
    %v224 = vpack.c.b16 %v188, %v184
    %v225 = vpack.c.b16 %v189, %v185
    %v226 = vpack.c.b16 %v190, %v186
    %v227 = vpack.c.b16 %v195, %v191
    %v228 = vpack.c.b16 %v196, %v192
    %v229 = vpack.c.b16 %v197, %v193
    %v230 = vpack.c.b16 %v198, %v194
    %263 = vmatpush.bf16.msra.mxu0 %v227
    %264 = vmatpush.bf16.msra.mxu0 %v223
    %265 = vmatpush.bf16.msra.mxu0 %v219
    %266 = vmatpush.bf16.msra.mxu0 %v215
    %267 = vmatpush.bf16.msra.mxu0 %v211
    %268 = vmatpush.bf16.msra.mxu0 %v207
    %269 = vmatpush.bf16.msra.mxu0 %v203
    %270 = vmatpush.bf16.msra.mxu0 %v199
    %271 = vmatmul.bf16.gmra.mxu0 %v60
    %v272 = vpop.f32.mrf.mxu0
    %v273 = vadd.f32 %v95, %v272
    %v274 = vpop.f32.mrf.mxu0
    %275 = vdwg.mxu0
    %276 = vmatpush.bf16.msra.mxu0 %v228
    %277 = vmatpush.bf16.msra.mxu0 %v224
    %278 = vmatpush.bf16.msra.mxu0 %v220
    %279 = vmatpush.bf16.msra.mxu0 %v216
    %280 = vmatpush.bf16.msra.mxu0 %v212
    %281 = vmatpush.bf16.msra.mxu0 %v208
    %282 = vmatpush.bf16.msra.mxu0 %v204
    %283 = vmatpush.bf16.msra.mxu0 %v200
    %284 = vmatmul.bf16.gmra.mxu0 %v60
    %v285 = vpop.f32.mrf.mxu0
    %v286 = vadd.f32 %v96, %v285
    %v287 = vpop.f32.mrf.mxu0
    %288 = vdwg.mxu0
    %289 = vmatpush.bf16.msra.mxu0 %v229
    %290 = vmatpush.bf16.msra.mxu0 %v225
    %291 = vmatpush.bf16.msra.mxu0 %v221
    %292 = vmatpush.bf16.msra.mxu0 %v217
    %293 = vmatpush.bf16.msra.mxu0 %v213
    %294 = vmatpush.bf16.msra.mxu0 %v209
    %295 = vmatpush.bf16.msra.mxu0 %v205
    %296 = vmatpush.bf16.msra.mxu0 %v201
    %297 = vmatmul.bf16.gmra.mxu0 %v60
    %v298 = vpop.f32.mrf.mxu0
    %v299 = vadd.f32 %v97, %v298
    %v300 = vpop.f32.mrf.mxu0
    %301 = vdwg.mxu0
    %302 = vmatpush.bf16.msra.mxu0 %v230
    %303 = vmatpush.bf16.msra.mxu0 %v226
    %304 = vmatpush.bf16.msra.mxu0 %v222
    %305 = vmatpush.bf16.msra.mxu0 %v218
    %306 = vmatpush.bf16.msra.mxu0 %v214
    %307 = vmatpush.bf16.msra.mxu0 %v210
    %308 = vmatpush.bf16.msra.mxu0 %v206
    %309 = vmatpush.bf16.msra.mxu0 %v202
    %310 = vmatmul.bf16.gmra.mxu0 %v60
    %v311 = vpop.f32.mrf.mxu0
    %v312 = vadd.f32 %v98, %v311
    %v313 = vpop.f32.mrf.mxu0
    %314 = vdwg.mxu0
    %v315 = vmul.f32 %v273, %v273
    %v316 = vmul.f32 %v286, %v286
    %v317 = vmul.f32 %v299, %v299
    %v318 = vmul.f32 %v312, %v312
    %v319 = vadd.f32 %v315, %v316
    %v320 = vadd.f32 %v319, %v317
    %v321 = vadd.f32 %v320, %v318
    %322 = vadd.xlane.f32.xlu0 %v321
    %v323 = vpop.xlane.xlu0 %322
    %v324 = vrsqrt.pop %v323
    %v325 = vmul.f32 %v324, %v323
    %v326 = vmul.f32 %v325, %v324
    %v327 = vmul.f32 0.5, %v326
    %v328 = vsub.f32 1.5, %v327
    %v329 = vmul.f32 %v324, %v328
    %v330 = vmul.f32 %v323, %v329
    %vm331 = vcmp.eq.f32.partialorder %v323, inf
    %v332 = vsel %vm331, %v323, %v330
    %vm333 = vcmp.eq.f32.partialorder %v323, 0.0
    %v334 = vand.u32 %v323, 2147483648
    %v335 = vsel %vm333, %v334, %v332
    %vm336 = vcmask 7168
    %337 = vst.msk [vmem:[%s4] sm:$0xff] %vm336, %v335
    %v338 = vmax.f32 %v323, 1e-24
    %v339 = vrsqrt.pop %v338
    %v340 = vmul.f32 %v339, %v338
    %v341 = vmul.f32 %v340, %v339
    %v342 = vmul.f32 0.5, %v341
    %v343 = vsub.f32 1.5, %v342
    %v344 = vmul.f32 %v339, %v343
    %vm345 = vweird.f32 %v338
    %vm346 = vweird.f32 %v339
    %vm347 = vmor %vm345, %vm346
    %v348 = vsel %vm347, %v339, %v344
    %v349 = vmul.f32 %v273, %v348
    %v350 = vmul.f32 %v286, %v348
    %v351 = vmul.f32 %v299, %v348
    %v352 = vmul.f32 %v312, %v348
    %v353 = vpack.c.bf16 %v350, %v349
    %v354 = vpack.c.bf16 %v352, %v351
    %355 = vst [vmem:[#allocation8] sm:$0xff] %v353
    %356 = vst [vmem:[#allocation8 + $0x8] sm:$0xff] %v354
    // Predicated region
    $region26: #{tpu_custom_call.1} parent=1 // pred_check
      _
    $region27: #{tpu_custom_call.1} parent=1 // pred_check_branch
      %358 = sbr.rel (0) target = $region29
    $region28: #{tpu_custom_call.1} parent=1 // pred_region
      %360 = vsyncadd [#allocation4], 0
      %s362 = sshll.u32 [#allocation8], 4
      %s363 = int_to_ptr.vmem [resolvable:$true] %s362
      %s364 = sshll.u32 %s3, 4
      %s365 = int_to_ptr.hbm [resolvable:$true] %s364
      %367 = dma.vmem_to_hbm [thread:$0]  %s363, 256, %s365, [#allocation4]
    $region29: #{tpu_custom_call.1} parent=1 // pred_fallthru
      _
    // Predicated region
    $region30: #{tpu_custom_call.1} parent=1 // pred_check
      _
    $region31: #{tpu_custom_call.1} parent=1 // pred_check_branch
      %369 = sbr.rel (0) target = $region33
    $region32: #{tpu_custom_call.1} parent=1 // pred_region
      _
    $region33: #{tpu_custom_call.1} parent=1 // pred_fallthru
      _
    // Predicated region
    $region34: #{tpu_custom_call.1} parent=1 // pred_check
      _
    $region35: #{tpu_custom_call.1} parent=1 // pred_check_branch
      %371 = sbr.rel (0) target = $region37
    $region36: #{tpu_custom_call.1} parent=1 // pred_region
      %373 = dma.done [#allocation4], 256
    $region37: #{tpu_custom_call.1} parent=1 // pred_fallthru
      _
    // Predicated region
    $region38: #{tpu_custom_call.1} parent=1 // pred_check
      _
    $region39: #{tpu_custom_call.1} parent=1 // pred_check_branch
      %375 = sbr.rel (0) target = $region41
    $region40: #{tpu_custom_call.1} parent=1 // pred_region
      _
    $region41: #{tpu_custom_call.1} parent=1 // pred_fallthru
      _
    %376 = vsyncpa [#allocation3], 1
    %377 = vsyncpa [#allocation6], 1
    %378 = vsyncpa [#allocation4], 1

</llo_original>
